<compile_context>
chip_gen: v7x
topology: tpu7x:2x2x1
jax: 0.10.0
libtpu: 0.0.40
codegen_flags: <defaults>
</compile_context>

<pallas_src>
import functools
import math

import jax
import jax.numpy as jnp
from jax.experimental import pallas as pl
from jax.experimental.pallas import tpu as pltpu


def _round_up(x, m):
    return ((x + m - 1) // m) * m


def _sublane(dtype):
    # Sublane packing: 8 rows for 4-byte, 16 for 2-byte, 32 for 1-byte dtypes.
    return max(8, 32 // jnp.dtype(dtype).itemsize)


def _apply_nonlinearity(y, non_linearity):
    # Epilogue stays in f32 (v5e VPU/EUP have no bf16 path).
    if non_linearity == "swish":
        return y * jax.nn.sigmoid(y)
    if non_linearity == "leaky_relu":
        return jax.nn.leaky_relu(y)  # slope 0.01 matches torch F.leaky_relu
    if non_linearity == "tanh":
        return jnp.tanh(y)
    if non_linearity == "linear":
        return y
    raise ValueError(f"unknown non_linearity: {non_linearity}")


# ----------------------------------------------------------------------------
# Kernels.  Ensemble dim is squeezed away by the BlockSpecs, so refs are 2-D:
#   x=(tile_m, tile_k), w=(tile_k, tile_n), b=(1, tile_n), o=(tile_m, tile_n).
# ----------------------------------------------------------------------------
def _kernel_single_k(x_ref, w_ref, b_ref, o_ref, *, non_linearity):
    y = jnp.dot(x_ref[...], w_ref[...], preferred_element_type=jnp.float32)
    y = y + b_ref[...].astype(jnp.float32)
    o_ref[...] = _apply_nonlinearity(y, non_linearity).astype(o_ref.dtype)


def _kernel_multi_k(x_ref, w_ref, b_ref, o_ref, acc_ref, *, non_linearity):
    k = pl.program_id(3)

    @pl.when(k == 0)
    def _():
        acc_ref[...] = jnp.zeros_like(acc_ref)

    acc_ref[...] += jnp.dot(
        x_ref[...], w_ref[...], preferred_element_type=jnp.float32
    )

    @pl.when(k == pl.num_programs(3) - 1)
    def _():
        y = acc_ref[...] + b_ref[...].astype(jnp.float32)
        o_ref[...] = _apply_nonlinearity(y, non_linearity).astype(o_ref.dtype)


# ----------------------------------------------------------------------------
# Generation-aware VMEM budgeting.
# ----------------------------------------------------------------------------
def _vmem_budget_bytes():
    """Returns (tile_footprint_budget, vmem_limit_bytes, physical_capacity)."""
    cap = 64 * 1024 * 1024  # conservative default: v7x per-TensorCore VMEM
    try:
        info = pltpu.get_tpu_info()
        cap_attr = getattr(info, "vmem_capacity_bytes", None)
        if cap_attr:
            cap = int(cap_attr)
    except Exception:
        pass
    # ~75% of physical for the (double-buffered) tiles, headroom for Mosaic
    # internal scratch.  v5e/v6e (128 MiB) -> ~96 MiB; v7x (64 MiB) -> ~44 MiB.
    budget = min(int(cap * 0.75), cap - 20 * 1024 * 1024)
    budget = max(budget, 16 * 1024 * 1024)
    limit = min(cap - 4 * 1024 * 1024, budget + 12 * 1024 * 1024)
    return budget, limit, cap


def _tile_footprint(tm, tn, tk, k_steps, xb, wb, ob):
    need = 2 * (tm * tk * xb + tk * tn * wb + tn * 4 + tm * tn * ob)
    if k_steps > 1:
        need += tm * tn * 4  # f32 accumulator scratch (single-buffered)
    return need


def _choose_tiles(B, n_in_p, n_out_p, xb, wb, ob, sub_m, budget):
    """Pick (tile_m, tile_n, tile_k) minimizing padded FLOPs, then grid steps."""
    b_aligned = _round_up(B, sub_m)
    m_cands = sorted(
        {t for t in (8, 16, 32, 64, 128, 256, 512, 1024)
         if t % sub_m == 0 and t <= b_aligned} | {b_aligned}
    )
    n_cands = sorted({t for t in (128, 256, 512) if t <= n_out_p} | {n_out_p})
    k_cands = sorted(
        {t for t in (128, 256, 512, 1024, 2048) if t <= n_in_p} | {n_in_p}
    )

    best_score, best = None, None
    for tm in m_cands:
        b_p = _round_up(b_aligned, tm)
        for tn in n_cands:
            n_pad = _round_up(n_out_p, tn)
            for tk in k_cands:
                k_pad = _round_up(n_in_p, tk)
                k_steps = k_pad // tk
                need = _tile_footprint(tm, tn, tk, k_steps, xb, wb, ob)
                if need > budget:
                    continue
                steps = (b_p // tm) * (n_pad // tn) * k_steps
                score = (b_p * n_pad * k_pad, steps, -(tm * tn * tk))
                if best_score is None or score < best_score:
                    best_score = score
                    best = (tm, tn, tk, b_p, n_pad, k_pad)

    if best is None:  # pathological budget: minimal legal tiles
        tm, tn, tk = sub_m, 128, 128
        best = (tm, tn, tk, _round_up(b_aligned, tm),
                _round_up(n_out_p, tn), _round_up(n_in_p, tk))
    return best


def _prep(arr, tgt_shape, dtype):
    """Cast then zero-pad trailing regions (no zeros+scatter round trip)."""
    if arr.dtype != jnp.dtype(dtype):
        arr = arr.astype(dtype)
    pads = tuple((0, t - s) for s, t in zip(arr.shape, tgt_shape))
    if any(p[1] for p in pads):
        arr = jnp.pad(arr, pads)
    return arr


# ----------------------------------------------------------------------------
# Public wrapper.
# ----------------------------------------------------------------------------
def ensemble_dense_layer(
    inp,
    weights,
    biases,
    *,
    non_linearity="swish",
    mxu_dtype=None,    # jnp.bfloat16 gives ~2-3x MXU throughput on v5e/v6e/v7x
    tile_m=None,       # optional overrides (rounded to legal multiples)
    tile_n=None,
    tile_k=None,
):
    """Forward pass of EnsembleDenseLayer: non_linearity(baddbmm(biases, inp, weights))."""
    E, B, n_in = inp.shape
    Ew, n_in_w, n_out = weights.shape
    assert Ew == E and n_in_w == n_in
    assert biases.shape == (E, 1, n_out)

    out_dtype = inp.dtype
    op_dtype = jnp.dtype(mxu_dtype) if mxu_dtype is not None else jnp.dtype(inp.dtype)

    xb = jnp.dtype(op_dtype).itemsize
    wb = xb
    ob = jnp.dtype(out_dtype).itemsize
    sub_m = max(_sublane(op_dtype), _sublane(out_dtype))

    n_in_p = _round_up(n_in, 128)
    n_out_p = _round_up(n_out, 128)

    budget, vmem_limit, cap = _vmem_budget_bytes()

    if tile_m is not None or tile_n is not None or tile_k is not None:
        tm = _round_up(tile_m if tile_m is not None else min(_round_up(B, sub_m), 512), sub_m)
        tn = _round_up(tile_n if tile_n is not None else min(n_out_p, 512), 128)
        tk = _round_up(tile_k if tile_k is not None else n_in_p, 128)
        B_p = _round_up(B, tm)
        N_p = _round_up(n_out_p, tn)
        K_p = _round_up(n_in_p, tk)
    else:
        tm, tn, tk, B_p, N_p, K_p = _choose_tiles(
            B, n_in_p, n_out_p, xb, wb, ob, sub_m, budget
        )

    m_steps = B_p // tm
    n_steps = N_p // tn
    k_steps = K_p // tk

    need = _tile_footprint(tm, tn, tk, k_steps, xb, wb, ob)
    vmem_limit = max(vmem_limit, min(cap, need + 8 * 1024 * 1024))

    # Zero K-padding contributes 0 to the matmul; padded rows/cols sliced off.
    x_p = _prep(inp, (E, B_p, K_p), op_dtype)
    w_p = _prep(weights, (E, K_p, N_p), op_dtype)
    b_p = _prep(biases, (E, 1, N_p), jnp.float32)

    flops = 2 * E * B_p * K_p * N_p
    transcendentals = E * B_p * N_p if non_linearity in ("swish", "tanh") else 0
    bytes_accessed = (
        x_p.size * xb + w_p.size * wb + b_p.size * 4 + E * B_p * N_p * ob
    )
    cost = pl.CostEstimate(
        flops=flops, transcendentals=transcendentals, bytes_accessed=bytes_accessed
    )

    if k_steps == 1:
        grid = (E, m_steps, n_steps)
        kernel = functools.partial(_kernel_single_k, non_linearity=non_linearity)
        in_specs = [
            # x tile resident across the inner N axis (index_map ignores n).
            pl.BlockSpec((pl.Squeezed(), tm, tk), lambda e, m, n: (e, m, 0)),
            pl.BlockSpec((pl.Squeezed(), tk, tn), lambda e, m, n: (e, 0, n)),
            pl.BlockSpec((pl.Squeezed(), 1, tn), lambda e, m, n: (e, 0, n)),
        ]
        out_spec = pl.BlockSpec((pl.Squeezed(), tm, tn), lambda e, m, n: (e, m, n))
        scratch = []
        dims = ("parallel", "parallel", "parallel")
    else:
        grid = (E, m_steps, n_steps, k_steps)
        kernel = functools.partial(_kernel_multi_k, non_linearity=non_linearity)
        in_specs = [
            pl.BlockSpec((pl.Squeezed(), tm, tk), lambda e, m, n, k: (e, m, k)),
            pl.BlockSpec((pl.Squeezed(), tk, tn), lambda e, m, n, k: (e, k, n)),
            pl.BlockSpec((pl.Squeezed(), 1, tn), lambda e, m, n, k: (e, 0, n)),
        ]
        out_spec = pl.BlockSpec(
            (pl.Squeezed(), tm, tn), lambda e, m, n, k: (e, m, n)
        )
        scratch = [pltpu.VMEM((tm, tn), jnp.float32)]
        dims = ("parallel", "parallel", "parallel", "arbitrary")

    out_p = pl.pallas_call(
        kernel,
        out_shape=jax.ShapeDtypeStruct((E, B_p, N_p), out_dtype),
        grid_spec=pltpu.PrefetchScalarGridSpec(
            num_scalar_prefetch=0,
            grid=grid,
            in_specs=in_specs,
            out_specs=out_spec,
            scratch_shapes=scratch,
        ),
        compiler_params=pltpu.CompilerParams(
            dimension_semantics=dims,
            vmem_limit_bytes=int(vmem_limit),
        ),
        cost_estimate=cost,
    )(x_p, w_p, b_p)

    return out_p[:, :B, :n_out]


def init_params(key, ensemble_size, n_in, n_out):
    """Deterministic xavier-uniform weights (swish branch) and zero biases."""
    bound = math.sqrt(6.0 / (n_in + n_out))
    weights = jax.random.uniform(
        key, (ensemble_size, n_in, n_out), jnp.float32, minval=-bound, maxval=bound
    )
    biases = jnp.zeros((ensemble_size, 1, n_out), jnp.float32)
    return weights, biases


if __name__ == "__main__":
    key = jax.random.PRNGKey(0)
    k_w, k_x, k_w2, k_x2, k_b2 = jax.random.split(key, 5)

    # --- 1) small shapes, default auto-tiled path (grid = (E,1,1)), swish -----
    ensemble_size, batch, n_in, n_out = 4, 8, 32, 32
    weights, biases = init_params(k_w, ensemble_size, n_in, n_out)
    inp = jax.random.normal(k_x, (ensemble_size, batch, n_in), jnp.float32)

    y_ref = jnp.einsum("ebi,eio->ebo", inp, weights) + biases
    ref = y_ref * jax.nn.sigmoid(y_ref)

    out = jax.block_until_ready(ensemble_dense_layer(inp, weights, biases))
    assert out.shape == (ensemble_size, batch, n_out)
    assert jnp.allclose(out, ref, atol=1e-5, rtol=1e-5)

    # --- 2) forced tiles to exercise M/N/K tiling + f32 accumulator, tanh -----
    E2, B2, ni2, no2 = 2, 24, 200, 136   # pads to K=256, N=256 -> 2 K-steps
    w2 = jax.random.normal(k_w2, (E2, ni2, no2), jnp.float32) * 0.05
    b2 = jax.random.normal(k_b2, (E2, 1, no2), jnp.float32) * 0.1
    x2 = jax.random.normal(k_x2, (E2, B2, ni2), jnp.float32)

    y2_ref = jnp.einsum("ebi,eio->ebo", x2, w2) + b2
    ref2 = jnp.tanh(y2_ref)

    out2 = jax.block_until_ready(
        ensemble_dense_layer(
            x2, w2, b2, non_linearity="tanh", tile_m=8, tile_n=128, tile_k=128
        )
    )
    assert out2.shape == (E2, B2, no2)
    assert jnp.allclose(out2, ref2, atol=1e-5, rtol=1e-5)

    # --- 3) bf16 MXU operands (fast path on all generations), f32 epilogue ----
    out_bf16 = jax.block_until_ready(
        ensemble_dense_layer(inp, weights, biases, mxu_dtype=jnp.bfloat16)
    )
    assert jnp.allclose(out_bf16, ref, atol=1e-1, rtol=5e-2)

    print("KERNEL_OK")
</pallas_src>

<mosaic_0001>
module attributes {stable_mosaic.version = 11 : i64} {
  func.func @_kernel_single_k(%arg0: i32, %arg1: i32, %arg2: i32, %arg3: memref<1x8x128xf32, #tpu.memory_space<vmem>>, %arg4: memref<1x128x128xf32, #tpu.memory_space<vmem>>, %arg5: memref<1x1x128xf32, #tpu.memory_space<vmem>>, %arg6: memref<1x8x128xf32, #tpu.memory_space<vmem>>) attributes {dimension_semantics = [#tpu.dimension_semantics<parallel>, #tpu.dimension_semantics<parallel>, #tpu.dimension_semantics<parallel>], iteration_bounds = array<i64: 4, 1, 1>, scalar_prefetch = 0 : i64, scratch_operands = 0 : i64, tpu.core_type = #tpu.core_type<tc>, window_params = [{transform_indices = @transform_0, window_bounds = array<i64: 1, 8, 128>}, {transform_indices = @transform_1, window_bounds = array<i64: 1, 128, 128>}, {transform_indices = @transform_2, window_bounds = array<i64: 1, 1, 128>}, {transform_indices = @transform_3, window_bounds = array<i64: 1, 8, 128>}]} {
    %c0 = arith.constant 0 : index
    %c0_0 = arith.constant 0 : index
    %c0_1 = arith.constant 0 : index
    %0 = vector.load %arg3[%c0, %c0_0, %c0_1] : memref<1x8x128xf32, #tpu.memory_space<vmem>>, vector<1x8x128xf32>
    %1 = vector.shape_cast %0 : vector<1x8x128xf32> to vector<8x128xf32>
    %c0_2 = arith.constant 0 : index
    %c0_3 = arith.constant 0 : index
    %c0_4 = arith.constant 0 : index
    %2 = vector.load %arg4[%c0_2, %c0_3, %c0_4] : memref<1x128x128xf32, #tpu.memory_space<vmem>>, vector<1x128x128xf32>
    %3 = vector.shape_cast %2 : vector<1x128x128xf32> to vector<128x128xf32>
    %cst = arith.constant dense<0.000000e+00> : vector<8x128xf32>
    %4 = tpu.matmul %1, %3, %cst {dimension_numbers = #tpu.dot_dimension_numbers<[1], [0], [0], [1], [0, 0, 1, 1], [], []>} : vector<8x128xf32>, vector<128x128xf32>, vector<8x128xf32> -> vector<8x128xf32>
    %c0_5 = arith.constant 0 : index
    %c0_6 = arith.constant 0 : index
    %c0_7 = arith.constant 0 : index
    %5 = vector.load %arg5[%c0_5, %c0_6, %c0_7] : memref<1x1x128xf32, #tpu.memory_space<vmem>>, vector<1x1x128xf32>
    %6 = vector.shape_cast %5 : vector<1x1x128xf32> to vector<1x128xf32>
    %7 = vector.broadcast %6 : vector<1x128xf32> to vector<8x128xf32>
    %8 = arith.addf %4, %7 : vector<8x128xf32>
    %9 = arith.negf %8 : vector<8x128xf32>
    %10 = math.exp %9 : vector<8x128xf32>
    %cst_8 = arith.constant 1.000000e+00 : f32
    %11 = vector.broadcast %cst_8 : f32 to vector<8x128xf32>
    %12 = arith.addf %11, %10 : vector<8x128xf32>
    %13 = arith.divf %11, %12 : vector<8x128xf32>
    %14 = arith.mulf %8, %13 : vector<8x128xf32>
    %c0_9 = arith.constant 0 : index
    %c0_10 = arith.constant 0 : index
    %c0_11 = arith.constant 0 : index
    %15 = vector.load %arg6[%c0_9, %c0_10, %c0_11] : memref<1x8x128xf32, #tpu.memory_space<vmem>>, vector<1x8x128xf32>
    %16 = vector.shape_cast %15 : vector<1x8x128xf32> to vector<8x128xf32>
    %17 = vector.shape_cast %14 : vector<8x128xf32> to vector<1x8x128xf32>
    tpu.vector_store %arg6[%c0_9, %c0_10, %c0_11], %17 {strides = array<i32>} : memref<1x8x128xf32, #tpu.memory_space<vmem>>, vector<1x8x128xf32>,
    return
  }
  func.func @transform_0(%arg0: i32, %arg1: i32, %arg2: i32) -> (i32, i32, i32) {
    %c0_i32 = arith.constant 0 : i32
    %c0_i32_0 = arith.constant 0 : i32
    return %arg0, %arg1, %c0_i32 : i32, i32, i32
  }
  func.func @transform_1(%arg0: i32, %arg1: i32, %arg2: i32) -> (i32, i32, i32) {
    %c0_i32 = arith.constant 0 : i32
    %c0_i32_0 = arith.constant 0 : i32
    return %arg0, %c0_i32, %arg2 : i32, i32, i32
  }
  func.func @transform_2(%arg0: i32, %arg1: i32, %arg2: i32) -> (i32, i32, i32) {
    %c0_i32 = arith.constant 0 : i32
    %c0_i32_0 = arith.constant 0 : i32
    return %arg0, %c0_i32, %arg2 : i32, i32, i32
  }
  func.func @transform_3(%arg0: i32, %arg1: i32, %arg2: i32) -> (i32, i32, i32) {
    %c0_i32 = arith.constant 0 : i32
    return %arg0, %arg1, %arg2 : i32, i32, i32
  }
}

</mosaic_0001>

<llo_original>
// kernel: tpu_custom_call.1
$region0: #{tpu_custom_call.1}
  #allocation0 [shape = 'u32[]', space=smem, size = 0x4, offset = 0x4, fixed_abs, tag = 'smem constant byte address 0x4 - core index']
  #allocation1 [shape = 'u32[144,128]{1,0:T(1,128)}', space=vmem, size = 0x12000, scoped, tag = 'internal scratch']
  %s0 = inlined_call_operand.hbm [shape: f32[4,8,128], index: 0, kind: input, shape index: {}]
  %s1 = inlined_call_operand.hbm [shape: f32[4,128,128], index: 1, kind: input, shape index: {}]
  %s2 = inlined_call_operand.vmem [shape: f32[4,1,128], index: 2, kind: input, shape index: {}]
  %s3 = inlined_call_operand.hbm [shape: f32[4,8,128], index: 3, kind: output, shape index: {}]
  %s4 = sld [smem:[#allocation0]]
  $region53: #{tpu_custom_call.1} parent=0
    _
  %s6 = ssub.s32 1, %s4
  %s7 = scalar_select 0, %s6, %s4
  $region1: #{tpu_custom_call.1} parent=0
    #allocation2 [shape = 'u8[8192]{0}', space=vmem, size = 0x2000, scoped, tag = 'input window, operand 0']
    #allocation3 [shape = 's32[2]{0}', space=sflag, size = 0x8, scoped, tag = 'scoped memory for tpu_custom_call.1']
    #allocation4 [shape = 's32[2]{0}', space=sflag, size = 0x8, scoped, tag = 'scoped memory for tpu_custom_call.1']
    #allocation5 [shape = 'u8[131072]{0}', space=vmem, size = 0x20000, scoped, tag = 'input window, operand 1']
    #allocation6 [shape = 's32[2]{0}', space=sflag, size = 0x8, scoped, tag = 'scoped memory for tpu_custom_call.1']
    #allocation7 [shape = 'u8[8192]{0}', space=vmem, size = 0x2000, scoped, tag = 'output window, operand 0']
    %8 = vsyncpa [#allocation3], 0
    %s9 = scalar_lea.sflag [#allocation3], 1
    %10 = vsyncpa %s9, 0
    %11 = vsyncpa [#allocation6], 0
    %s12 = scalar_lea.sflag [#allocation6], 1
    %13 = vsyncpa %s12, 0
    %14 = vsyncpa [#allocation4], 0
    %s15 = scalar_lea.sflag [#allocation4], 1
    %16 = vsyncpa %s15, 0
    loop: start=0, step=1, limit=6
    $region2: #{tpu_custom_call.1} parent=1 // loop_pre_header
      _
    $region3: #{tpu_custom_call.1} parent=1 // loop_header
      %s18 = sphi 0, %s22
      %p19 = scmp.ge.s32.totalorder %s18, 6
      %s25 = sphi 0, %s44
      %s26 = sphi 0, %s40
      %s27 = sphi 0, %s36
      %s28 = sphi 0, %s25
      %s29 = sphi 0, %s26
      %s30 = sphi 0, %s27
      %s31 = sphi 0, %s28
      %s32 = sphi 0, %s29
      %s33 = sphi 0, %s30
      %s49 = sphi 0, %s51
      %s52 = sphi 0, %s49
      %s53 = sphi 0, %s52
      %s69 = sphi 0, %s53
      %s77 = sphi 0, %s79
      %s80 = sphi 0, %s77
      %s81 = sphi 0, %s80
      %s97 = sphi 0, %s81
      %s105 = sphi 0, %s107
      %s108 = sphi 0, %s105
      %s109 = sphi 0, %s108
      %s125 = sphi 0, %s109
      %s135 = sphi 0, %s137
      %s138 = sphi 0, %s135
      %s139 = sphi 0, %s138
      %s155 = sphi 0, %s139
    $region4: #{tpu_custom_call.1} parent=1 // loop_header_branch
      %21 = sbr.rel (%p19) target = $region8
    $region5: #{tpu_custom_call.1} parent=1 // loop_body
      %s23 = ssub.s32 %s18, 1
      %s24 = ssub.s32 %s18, 2
      %s34 = sadd.s32 1, %s27
      %p35 = scmp.ge.s32.totalorder %s34, 1
      %s36 = scalar_select %p35, 0, %s34
      %s37 = sadd.s32 1, %s26
      %s38 = scalar_select %p35, %s37, %s26
      %p39 = scmp.ge.s32.totalorder %s38, 1
      %s40 = scalar_select %p39, 0, %s38
      %s41 = sadd.s32 1, %s25
      %s42 = scalar_select %p39, %s41, %s25
      %p43 = scmp.ge.s32.totalorder %s42, 4
      %s44 = scalar_select %p43, 0, %s42
      %s45 = ssub.s32 %s25, %s44
      %s46 = ssub.s32 %s26, %s40
      %s47 = sor.u32 %s45, %s46
      %p48 = scmp.eq.s32.totalorder %s47, 0
      %s50 = sadd.s32 %s49, 1
      %s51 = scalar_select %p48, %s49, %s50
      %p54 = pneg %p48
      %p55 = scmp.eq.s32.totalorder %s18, 3
      %p56 = por %p54, %p55
      %p57 = scmp.ne.s32.totalorder %s49, %s52
      %p58 = scmp.eq.s32.totalorder %s18, 0
      %p59 = por %p57, %p58
      %p60 = scmp.ne.s32.totalorder %s49, %s52
      %p61 = scmp.eq.s32.totalorder %s23, 3
      %p62 = por %p60, %p61
      %p63 = scmp.ne.s32.totalorder %s52, %s53
      %p64 = scmp.eq.s32.totalorder %s23, 0
      %p65 = por %p63, %p64
      %p66 = scmp.ne.s32.totalorder %s52, %s53
      %p67 = scmp.eq.s32.totalorder %s24, 3
      %p68 = por %p66, %p67
      %p70 = scmp.ne.s32.totalorder %s53, %s69
      %p71 = scmp.eq.s32.totalorder %s24, 0
      %p72 = por %p70, %p71
      %s73 = ssub.s32 %s25, %s44
      %s74 = ssub.s32 %s27, %s36
      %s75 = sor.u32 %s73, %s74
      %p76 = scmp.eq.s32.totalorder %s75, 0
      %s78 = sadd.s32 %s77, 1
      %s79 = scalar_select %p76, %s77, %s78
      %p82 = pneg %p76
      %p83 = scmp.eq.s32.totalorder %s18, 3
      %p84 = por %p82, %p83
      %p85 = scmp.ne.s32.totalorder %s77, %s80
      %p86 = scmp.eq.s32.totalorder %s18, 0
      %p87 = por %p85, %p86
      %p88 = scmp.ne.s32.totalorder %s77, %s80
      %p89 = scmp.eq.s32.totalorder %s23, 3
      %p90 = por %p88, %p89
      %p91 = scmp.ne.s32.totalorder %s80, %s81
      %p92 = scmp.eq.s32.totalorder %s23, 0
      %p93 = por %p91, %p92
      %p94 = scmp.ne.s32.totalorder %s80, %s81
      %p95 = scmp.eq.s32.totalorder %s24, 3
      %p96 = por %p94, %p95
      %p98 = scmp.ne.s32.totalorder %s81, %s97
      %p99 = scmp.eq.s32.totalorder %s24, 0
      %p100 = por %p98, %p99
      %s101 = ssub.s32 %s25, %s44
      %s102 = ssub.s32 %s27, %s36
      %s103 = sor.u32 %s101, %s102
      %p104 = scmp.eq.s32.totalorder %s103, 0
      %s106 = sadd.s32 %s105, 1
      %s107 = scalar_select %p104, %s105, %s106
      %p110 = pneg %p104
      %p111 = scmp.eq.s32.totalorder %s18, 3
      %p112 = por %p110, %p111
      %p113 = scmp.ne.s32.totalorder %s105, %s108
      %p114 = scmp.eq.s32.totalorder %s18, 0
      %p115 = por %p113, %p114
      %p116 = scmp.ne.s32.totalorder %s105, %s108
      %p117 = scmp.eq.s32.totalorder %s23, 3
      %p118 = por %p116, %p117
      %p119 = scmp.ne.s32.totalorder %s108, %s109
      %p120 = scmp.eq.s32.totalorder %s23, 0
      %p121 = por %p119, %p120
      %p122 = scmp.ne.s32.totalorder %s108, %s109
      %p123 = scmp.eq.s32.totalorder %s24, 3
      %p124 = por %p122, %p123
      %p126 = scmp.ne.s32.totalorder %s109, %s125
      %p127 = scmp.eq.s32.totalorder %s24, 0
      %p128 = por %p126, %p127
      %s129 = ssub.s32 %s25, %s44
      %s130 = ssub.s32 %s26, %s40
      %s131 = sor.u32 %s129, %s130
      %s132 = ssub.s32 %s27, %s36
      %s133 = sor.u32 %s131, %s132
      %p134 = scmp.eq.s32.totalorder %s133, 0
      %s136 = sadd.s32 %s135, 1
      %s137 = scalar_select %p134, %s135, %s136
      %p140 = pneg %p134
      %p141 = scmp.eq.s32.totalorder %s18, 3
      %p142 = por %p140, %p141
      %p143 = scmp.ne.s32.totalorder %s135, %s138
      %p144 = scmp.eq.s32.totalorder %s18, 0
      %p145 = por %p143, %p144
      %p146 = scmp.ne.s32.totalorder %s135, %s138
      %p147 = scmp.eq.s32.totalorder %s23, 3
      %p148 = por %p146, %p147
      %p149 = scmp.ne.s32.totalorder %s138, %s139
      %p150 = scmp.eq.s32.totalorder %s23, 0
      %p151 = por %p149, %p150
      %p152 = scmp.ne.s32.totalorder %s138, %s139
      %p153 = scmp.eq.s32.totalorder %s24, 3
      %p154 = por %p152, %p153
      %p156 = scmp.ne.s32.totalorder %s139, %s155
      %p157 = scmp.eq.s32.totalorder %s24, 0
      %p158 = por %p156, %p157
      %p159 = scmp.le.s32.totalorder 1, %s18
      %p160 = scmp.lt.s32.totalorder %s18, 5
      %p161 = pnand %p159, %p160
      %p162 = pneg %p161
      // Predicated region
      $region9: #{tpu_custom_call.1} parent=5 // pred_check
        _
      $region10: #{tpu_custom_call.1} parent=5 // pred_check_branch
        %164 = sbr.rel (%p161) target = $region12
      $region11: #{tpu_custom_call.1} parent=5 // pred_region
        %s165 = ssub.s32 %s18, 1
      $region12: #{tpu_custom_call.1} parent=5 // pred_fallthru
        _
      %p166 = scmp.lt.s32.totalorder %s18, 4
      // Predicated region
      $region13: #{tpu_custom_call.1} parent=5 // pred_check
        %p167 = pneg %p166
      $region14: #{tpu_custom_call.1} parent=5 // pred_check_branch
        %169 = sbr.rel (%p167) target = $region16
      $region15: #{tpu_custom_call.1} parent=5 // pred_region
        // Predicated region
        $region17: #{tpu_custom_call.1} parent=15 // pred_check
          %p170 = pneg %p59
        $region18: #{tpu_custom_call.1} parent=15 // pred_check_branch
          %172 = sbr.rel (%p170) target = $region20
        $region19: #{tpu_custom_call.1} parent=15 // pred_region
          %s173 = sand.u32 %s49, 1
          %s174 = scalar_lea.sflag [#allocation3], %s173
          %s175 = sand.u32 %s49, 1
          %s176 = smul.addr %s175, 8
          %s177 = scalar_lea.vmem [#allocation2], %s176
          %s179 = ssub.s32 128, 128
          %180 = vsyncadd %s174, %s179
          %s181 = sadd.s32 %s26, %s25
          %s182 = smul.addr %s181, 128
          %s183 = scalar_lea.hbm %s0, %s182
          %s185 = sshll.u32 %s177, 4
          %s186 = int_to_ptr.vmem [resolvable:$true] %s185
          %188 = dma.hbm_to_vmem [thread:$0]  %s183, 128, %s186, %s174
        $region20: #{tpu_custom_call.1} parent=15 // pred_fallthru
          _
        // Predicated region
        $region21: #{tpu_custom_call.1} parent=15 // pred_check
          %p189 = pneg %p87
        $region22: #{tpu_custom_call.1} parent=15 // pred_check_branch
          %191 = sbr.rel (%p189) target = $region24
        $region23: #{tpu_custom_call.1} parent=15 // pred_region
          %s192 = sand.u32 %s77, 1
          %s193 = scalar_lea.sflag [#allocation6], %s192
          %s194 = sand.u32 %s77, 1
          %s195 = smul.addr %s194, 128
          %s196 = scalar_lea.vmem [#allocation5], %s195
          %s198 = ssub.s32 2048, 2048
          %199 = vsyncadd %s193, %s198
          %s200 = smul.addr %s25, 16
          %s201 = sadd.s32 %s27, %s200
          %s202 = smul.addr %s201, 128
          %s203 = scalar_lea.hbm %s1, %s202
          %s204 = sshll.u32 %s196, 4
          %s205 = int_to_ptr.vmem [resolvable:$true] %s204
          %210 = dma.hbm_to_vmem [thread:$0]  %s203, 2048, %s205, %s193, 128, 128, 8
        $region24: #{tpu_custom_call.1} parent=15 // pred_fallthru
          _
        // Predicated region
        $region25: #{tpu_custom_call.1} parent=15 // pred_check
          %p211 = pneg %p115
        $region26: #{tpu_custom_call.1} parent=15 // pred_check_branch
          %213 = sbr.rel (%p211) target = $region28
        $region27: #{tpu_custom_call.1} parent=15 // pred_region
          %p214 = scmp.lt.s32.totalorder %s25, 3
          %s215 = scalar_select %p214, %s25, 3
          %p216 = scmp.lt.s32.totalorder %s27, 0
          %s217 = scalar_select %p216, %s27, 0
          %s218 = sadd.s32 %s217, %s215
          %s219 = scalar_lea.vmem %s2, %s218
        $region28: #{tpu_custom_call.1} parent=15 // pred_fallthru
          _
      $region16: #{tpu_custom_call.1} parent=5 // pred_fallthru
        _
      %p220 = scmp.le.s32.totalorder 1, %s18
      %p221 = scmp.lt.s32.totalorder %s18, 5
      %p222 = pnand %p220, %p221
      %p223 = pneg %p222
      // Predicated region
      $region29: #{tpu_custom_call.1} parent=5 // pred_check
        _
      $region30: #{tpu_custom_call.1} parent=5 // pred_check_branch
        %225 = sbr.rel (%p222) target = $region32
      $region31: #{tpu_custom_call.1} parent=5 // pred_region
        %s226 = ssub.s32 %s18, 1
        %s227 = sand.u32 %s52, 1
        %s228 = scalar_lea.sflag [#allocation3], %s227
        %s229 = sand.u32 %s52, 1
        %s230 = smul.addr %s229, 8
        %s231 = scalar_lea.vmem [#allocation2], %s230
        // Predicated region
        $region33: #{tpu_custom_call.1} parent=31 // pred_check
          %p232 = pneg %p65
        $region34: #{tpu_custom_call.1} parent=31 // pred_check_branch
          %234 = sbr.rel (%p232) target = $region36
        $region35: #{tpu_custom_call.1} parent=31 // pred_region
          %235 = dma.done %s228, 128
        $region36: #{tpu_custom_call.1} parent=31 // pred_fallthru
          _
        %s236 = sand.u32 %s80, 1
        %s237 = scalar_lea.sflag [#allocation6], %s236
        %s238 = sand.u32 %s80, 1
        %s239 = smul.addr %s238, 128
        %s240 = scalar_lea.vmem [#allocation5], %s239
        // Predicated region
        $region37: #{tpu_custom_call.1} parent=31 // pred_check
          %p241 = pneg %p93
        $region38: #{tpu_custom_call.1} parent=31 // pred_check_branch
          %243 = sbr.rel (%p241) target = $region40
        $region39: #{tpu_custom_call.1} parent=31 // pred_region
          %244 = dma.done %s237, 2048
        $region40: #{tpu_custom_call.1} parent=31 // pred_fallthru
          _
        %s245 = sand.u32 %s52, 1
        %s246 = scalar_lea.sflag [#allocation3], %s245
        %s247 = sand.u32 %s52, 1
        %s248 = smul.addr %s247, 8
        %s249 = scalar_lea.vmem [#allocation2], %s248
        %p250 = pneg %p65
        %p251 = pneg %p62
        %s252 = sand.u32 %s80, 1
        %s253 = scalar_lea.sflag [#allocation6], %s252
        %s254 = sand.u32 %s80, 1
        %s255 = smul.addr %s254, 128
        %s256 = scalar_lea.vmem [#allocation5], %s255
        %p257 = pneg %p93
        %p258 = pneg %p90
        %p259 = scmp.lt.s32.totalorder %s28, 3
        %s260 = scalar_select %p259, %s28, 3
        %p261 = scmp.lt.s32.totalorder %s30, 0
        %s262 = scalar_select %p261, %s30, 0
        %s263 = sadd.s32 %s262, %s260
        %s264 = scalar_lea.vmem %s2, %s263
        %p265 = pneg %p121
        %p266 = pneg %p118
        %p267 = pneg %p151
        %p268 = pneg %p148
        %s269 = sand.u32 %s138, 1
        %s270 = scalar_lea.sflag [#allocation4], %s269
        %s271 = sand.u32 %s138, 1
        %s272 = smul.addr %s271, 8
        %s273 = scalar_lea.vmem [#allocation7], %s272
        %p274 = scmp.lt.s32.totalorder %s28, 3
        %s275 = scalar_select %p274, %s28, 3
        %p276 = scmp.lt.s32.totalorder %s30, 0
        %s277 = scalar_select %p276, %s30, 0
        %s278 = sadd.s32 %s277, %s275
        %s279 = scalar_lea.vmem %s2, %s278
        %v280 = vld [vmem:[%s231] sm:$0xff]
        %v281 = vld [vmem:[%s240] sm:$0xff]
        %v282 = vld [vmem:[%s240 + $0x8] sm:$0xff]
        %v283 = vld [vmem:[%s240 + $0x10] sm:$0xff]
        %v284 = vld [vmem:[%s240 + $0x18] sm:$0xff]
        %v285 = vld [vmem:[%s240 + $0x20] sm:$0xff]
        %v286 = vld [vmem:[%s240 + $0x28] sm:$0xff]
        %v287 = vld [vmem:[%s240 + $0x30] sm:$0xff]
        %v288 = vld [vmem:[%s240 + $0x38] sm:$0xff]
        %v289 = vld [vmem:[%s240 + $0x40] sm:$0xff]
        %v290 = vld [vmem:[%s240 + $0x48] sm:$0xff]
        %v291 = vld [vmem:[%s240 + $0x50] sm:$0xff]
        %v292 = vld [vmem:[%s240 + $0x58] sm:$0xff]
        %v293 = vld [vmem:[%s240 + $0x60] sm:$0xff]
        %v294 = vld [vmem:[%s240 + $0x68] sm:$0xff]
        %v295 = vld [vmem:[%s240 + $0x70] sm:$0xff]
        %v296 = vld [vmem:[%s240 + $0x78] sm:$0xff]
        %v297 = vld [vmem:[%s279] sm:$0x1]
        %v299 = vlaneseq
        %v300 = vshrl.u32 %v299, 7
        %v301 = vsub.s32 0, %v300
        %v302 = vrot.slane %v297, %v301
        %304 = vmatprep.subr.mxu0 0.0
        %305 = vmatpush1.msra.mxu0 %v281
        %306 = vmatprep.subr.mxu0 0.0
        %307 = vmatpush1.msra.mxu0 %v282
        %308 = vmatprep.subr.mxu0 0.0
        %309 = vmatpush1.msra.mxu0 %v283
        %310 = vmatprep.subr.mxu0 0.0
        %311 = vmatpush1.msra.mxu0 %v284
        %312 = vmatprep.subr.mxu0 0.0
        %313 = vmatpush1.msra.mxu0 %v285
        %314 = vmatprep.subr.mxu0 0.0
        %315 = vmatpush1.msra.mxu0 %v286
        %316 = vmatprep.subr.mxu0 0.0
        %317 = vmatpush1.msra.mxu0 %v287
        %318 = vmatprep.subr.mxu0 0.0
        %319 = vmatpush1.msra.mxu0 %v288
        %320 = vmatprep.subr.mxu0 0.0
        %321 = vmatpush1.msra.mxu0 %v289
        %322 = vmatprep.subr.mxu0 0.0
        %323 = vmatpush1.msra.mxu0 %v290
        %324 = vmatprep.subr.mxu0 0.0
        %325 = vmatpush1.msra.mxu0 %v291
        %326 = vmatprep.subr.mxu0 0.0
        %327 = vmatpush1.msra.mxu0 %v292
        %328 = vmatprep.subr.mxu0 0.0
        %329 = vmatpush1.msra.mxu0 %v293
        %330 = vmatprep.subr.mxu0 0.0
        %331 = vmatpush1.msra.mxu0 %v294
        %332 = vmatprep.subr.mxu0 0.0
        %333 = vmatpush1.msra.mxu0 %v295
        %334 = vmatprep.subr.mxu0 0.0
        %335 = vmatpush1.msra.mxu0 %v296
        %336 = vmatprep.subr.mxu0 0.0
        %337 = vmatpush1.msra.mxu0 0.0
        %338 = vmatprep.subr.mxu0 0.0
        %339 = vmatpush1.msra.mxu0 0.0
        %340 = vmatprep.subr.mxu0 0.0
        %341 = vmatpush1.msra.mxu0 0.0
        %342 = vmatprep.subr.mxu0 0.0
        %343 = vmatpush1.msra.mxu0 0.0
        %344 = vmatprep.subr.mxu0 0.0
        %345 = vmatpush1.msra.mxu0 0.0
        %346 = vmatprep.subr.mxu0 0.0
        %347 = vmatpush1.msra.mxu0 0.0
        %348 = vmatprep.subr.mxu0 0.0
        %349 = vmatpush1.msra.mxu0 0.0
        %350 = vmatprep.subr.mxu0 0.0
        %351 = vmatpush1.msra.mxu0 0.0
        %352 = vmatprep.subr.mxu0 0.0
        %353 = vmatpush1.msra.mxu0 0.0
        %354 = vmatprep.subr.mxu0 0.0
        %355 = vmatpush1.msra.mxu0 0.0
        %356 = vmatprep.subr.mxu0 0.0
        %357 = vmatpush1.msra.mxu0 0.0
        %358 = vmatprep.subr.mxu0 0.0
        %359 = vmatpush1.msra.mxu0 0.0
        %360 = vmatprep.subr.mxu0 0.0
        %361 = vmatpush1.msra.mxu0 0.0
        %362 = vmatprep.subr.mxu0 0.0
        %363 = vmatpush1.msra.mxu0 0.0
        %364 = vmatprep.subr.mxu0 0.0
        %365 = vmatpush1.msra.mxu0 0.0
        %366 = vmatprep.subr.mxu0 0.0
        %367 = vmatpush1.msra.mxu0 0.0
        %368 = vmatprep.mubr.f32.mxu0 0.0
        %369 = vmatmul.mubr.f32.gmra.mrb[0].mxu0 %v280
        %v370 = vpop.f32.mrb[0].mxu0
        %v371 = vadd.f32 %v302, %v370
        %v372 = vpop.f32.mrb[0].mxu0
        %373 = vdwg.mxu0
        %v374 = vxor.u32 %v371, 2147483648
        %v375 = vmul.f32 %v374, 1.442695
        %v376 = vpow.pop %v375
        %v377 = vadd.f32 %v376, 1.0
        %v378 = vrcp.pop %v377
        %v379 = vmul.f32 1.0, %v378
        %v380 = vmul.f32 %v371, %v379
        %381 = vst [vmem:[%s273] sm:$0xff] %v380
        %s382 = sand.u32 %s138, 1
        %s383 = scalar_lea.sflag [#allocation4], %s382
        %s384 = sand.u32 %s138, 1
        %s385 = smul.addr %s384, 8
        %s386 = scalar_lea.vmem [#allocation7], %s385
        // Predicated region
        $region41: #{tpu_custom_call.1} parent=31 // pred_check
          %p387 = pneg %p148
        $region42: #{tpu_custom_call.1} parent=31 // pred_check_branch
          %389 = sbr.rel (%p387) target = $region44
        $region43: #{tpu_custom_call.1} parent=31 // pred_region
          %s391 = ssub.s32 128, 128
          %392 = vsyncadd %s383, %s391
          %s393 = sadd.s32 %s30, %s29
          %s394 = sadd.s32 %s393, %s28
          %s395 = smul.addr %s394, 128
          %s396 = scalar_lea.hbm %s3, %s395
          %s398 = sshll.u32 %s386, 4
          %s399 = int_to_ptr.vmem [resolvable:$true] %s398
          %401 = dma.vmem_to_hbm [thread:$0]  %s399, 128, %s396, %s383
        $region44: #{tpu_custom_call.1} parent=31 // pred_fallthru
          _
      $region32: #{tpu_custom_call.1} parent=5 // pred_fallthru
        _
      %p402 = scmp.le.s32.totalorder 2, %s18
      // Predicated region
      $region45: #{tpu_custom_call.1} parent=5 // pred_check
        %p403 = pneg %p402
      $region46: #{tpu_custom_call.1} parent=5 // pred_check_branch
        %405 = sbr.rel (%p403) target = $region48
      $region47: #{tpu_custom_call.1} parent=5 // pred_region
        %s406 = ssub.s32 %s18, 2
        // Predicated region
        $region49: #{tpu_custom_call.1} parent=47 // pred_check
          %p407 = pneg %p154
        $region50: #{tpu_custom_call.1} parent=47 // pred_check_branch
          %409 = sbr.rel (%p407) target = $region52
        $region51: #{tpu_custom_call.1} parent=47 // pred_region
          %s410 = sand.u32 %s139, 1
          %s411 = scalar_lea.sflag [#allocation4], %s410
          %s412 = sand.u32 %s139, 1
          %s413 = smul.addr %s412, 8
          %s414 = scalar_lea.vmem [#allocation7], %s413
          %415 = dma.done %s411, 128
        $region52: #{tpu_custom_call.1} parent=47 // pred_fallthru
          _
      $region48: #{tpu_custom_call.1} parent=5 // pred_fallthru
        _
    $region6: #{tpu_custom_call.1} parent=1 // loop_footer
      %s22 = sadd.s32 1, %s18
    $region7: #{tpu_custom_call.1} parent=1 // loop_footer_branch
      %17 = sbr.rel target = $region3
    $region8: #{tpu_custom_call.1} parent=1 // loop_exit
      _
    %416 = vsyncpa [#allocation3], 1
    %s417 = scalar_lea.sflag [#allocation3], 1
    %418 = vsyncpa %s417, 1
    %419 = vsyncpa [#allocation6], 1
    %s420 = scalar_lea.sflag [#allocation6], 1
    %421 = vsyncpa %s420, 1
    %422 = vsyncpa [#allocation4], 1
    %s423 = scalar_lea.sflag [#allocation4], 1
    %424 = vsyncpa %s423, 1

</llo_original>
